<compile_context>
chip_gen: v7x
topology: tpu7x:2x2x1
jax: 0.10.0
libtpu: 0.0.40
codegen_flags: <defaults>
</compile_context>

<pallas_src>
import functools

import jax
import jax.numpy as jnp
from jax.experimental import pallas as pl
from jax.experimental.pallas import tpu as pltpu

SELU_ALPHA = 1.6732632423543772
SELU_SCALE = 1.0507009873554805
NEG_BIG = -1e30  # mask value folded into the padded classifier bias


def _round_up(n, m):
    return ((n + m - 1) // m) * m


def _cdiv(a, b):
    return (a + b - 1) // b


def _selu(v):
    # exp only on the (clamped) negative branch: no overflow on the discarded side.
    neg = SELU_ALPHA * (jnp.exp(jnp.minimum(v, 0.0)) - 1.0)
    return SELU_SCALE * jnp.where(v > 0, v, neg)


def classifier_kernel(x_ref, w1_ref, b1_ref, w2_ref, b2_ref, w3_ref, b3_ref,
                      wc_ref, bc_ref, out_ref):
    x = x_ref[...]

    h = _selu(jnp.dot(x, w1_ref[...], preferred_element_type=jnp.float32) + b1_ref[...])
    h = _selu(jnp.dot(h.astype(w2_ref.dtype), w2_ref[...],
                      preferred_element_type=jnp.float32) + b2_ref[...])
    h = _selu(jnp.dot(h.astype(w3_ref.dtype), w3_ref[...],
                      preferred_element_type=jnp.float32) + b3_ref[...])
    logits = jnp.dot(h.astype(wc_ref.dtype), wc_ref[...],
                     preferred_element_type=jnp.float32) + bc_ref[...]

    # Padded class columns already carry logits = -1e30 (mask folded into bc in
    # prepare_params; padded Wc columns are zero), so no in-kernel masking is
    # needed before the log-softmax reduction -- they contribute exp(...) = 0.
    m = jnp.max(logits, axis=-1, keepdims=True)
    lse = jnp.log(jnp.sum(jnp.exp(logits - m), axis=-1, keepdims=True)) + m
    out_ref[...] = (logits - lse).astype(out_ref.dtype)


def prepare_params(params, *, mat_dtype=jnp.bfloat16):
    """One-time pad + cast of the parameters (hoisted out of the per-call path).

    - feature dim, hidden dim and class dim are zero-padded to multiples of 128
      (lane-dense VMEM layouts / full-lane DMAs),
    - padded classifier-bias entries are set to -1e30 so padded class logits are
      masked "for free" (no in-kernel mask ops),
    - weights cast to bf16 (MXU inputs), biases kept in f32.
    """
    w1, b1, w2, b2, w3, b3, wc, bc = params
    d_in, h = w1.shape
    c = wc.shape[1]
    d_pad = _round_up(d_in, 128)
    h_pad = _round_up(h, 128)
    c_pad = _round_up(c, 128)

    # Zero-padding is exact through SELU: SELU(0) == 0, and zero rows/cols of the
    # next weight matrix contribute nothing.
    w1 = jnp.pad(w1, ((0, d_pad - d_in), (0, h_pad - h)))
    b1 = jnp.pad(b1, ((0, 0), (0, h_pad - h)))
    w2 = jnp.pad(w2, ((0, h_pad - h), (0, h_pad - h)))
    b2 = jnp.pad(b2, ((0, 0), (0, h_pad - h)))
    w3 = jnp.pad(w3, ((0, h_pad - h), (0, h_pad - h)))
    b3 = jnp.pad(b3, ((0, 0), (0, h_pad - h)))
    wc = jnp.pad(wc, ((0, h_pad - h), (0, c_pad - c)))
    # Fold the class-padding mask into the bias.
    bc = jnp.pad(bc, ((0, 0), (0, c_pad - c)), constant_values=NEG_BIG)

    prepared = (w1.astype(mat_dtype), b1.astype(jnp.float32),
                w2.astype(mat_dtype), b2.astype(jnp.float32),
                w3.astype(mat_dtype), b3.astype(jnp.float32),
                wc.astype(mat_dtype), bc.astype(jnp.float32))
    meta = dict(d_in=d_in, d_pad=d_pad, c=c, c_pad=c_pad)
    return prepared, meta


def _choose_batch_tile(batch, batch_tile):
    if batch_tile is not None:
        return max(16, _round_up(batch_tile, 16))
    b16 = _round_up(batch, 16)
    # Large tiles amortize the ~0.35us per-grid-step overhead; keep >=2
    # "parallel" steps when the batch allows so both v7x TensorCores get work.
    tb = _round_up(_cdiv(b16, 2), 16)
    return max(16, min(tb, 2048, b16))


def classifier_forward(x, prepared, meta, *, batch_tile=None):
    """x: (B, input_size*2+1) float32. Returns (B, category_size) log-probs (f32)."""
    w1m, b1f, w2m, b2f, w3m, b3f, wcm, bcf = prepared
    B, d_in = x.shape
    assert d_in == meta["d_in"]
    d_pad, c, c_pad = meta["d_pad"], meta["c"], meta["c_pad"]

    tb = _choose_batch_tile(B, batch_tile)
    b_pad = _round_up(B, tb)

    # Cast *before* padding: a single bf16 materialization of the padded input
    # (pad + convert fuse when this wrapper is jitted).
    x_m = x.astype(w1m.dtype)
    if b_pad != B or d_pad != d_in:
        x_m = jnp.pad(x_m, ((0, b_pad - B), (0, d_pad - d_in)))

    grid = (b_pad // tb,)

    def full(arr):
        # Whole (small) parameter block with a constant index map: stays resident
        # in VMEM across every grid step (no per-step re-DMA).
        return pl.BlockSpec(arr.shape, lambda i: (0,) * arr.ndim)

    out_padded = pl.pallas_call(
        classifier_kernel,
        out_shape=jax.ShapeDtypeStruct((b_pad, c_pad), jnp.float32),
        grid_spec=pltpu.PrefetchScalarGridSpec(
            num_scalar_prefetch=0,
            grid=grid,
            in_specs=[
                pl.BlockSpec((tb, d_pad), lambda i: (i, 0)),
                full(w1m), full(b1f),
                full(w2m), full(b2f),
                full(w3m), full(b3f),
                full(wcm), full(bcf),
            ],
            out_specs=pl.BlockSpec((tb, c_pad), lambda i: (i, 0)),
        ),
        compiler_params=pltpu.CompilerParams(
            dimension_semantics=("parallel",)),
    )(x_m, w1m, b1f, w2m, b2f, w3m, b3f, wcm, bcf)

    return out_padded[:B, :c]


def init_params(key, input_size, hidden_size, category_size):
    d_in = input_size * 2 + 1
    h2 = hidden_size * 2
    dims = [(d_in, h2), (h2, h2), (h2, h2), (h2, category_size)]
    params = []
    for di, do in dims:
        kw, kb, key = jax.random.split(key, 3)
        # deterministic init mimicking PyTorch Linear default (uniform +/- 1/sqrt(fan_in))
        bound = 1.0 / jnp.sqrt(di)
        w = jax.random.uniform(kw, (di, do), jnp.float32, -bound, bound)
        b = jax.random.uniform(kb, (1, do), jnp.float32, -bound, bound)
        params += [w, b]
    return tuple(params)


def reference_forward(x, params, *, mat_dtype=jnp.float32):
    w1, b1, w2, b2, w3, b3, wc, bc = params

    def mm(a, w):
        return jnp.dot(a.astype(mat_dtype), w.astype(mat_dtype),
                       preferred_element_type=jnp.float32)

    h = jax.nn.selu(mm(x, w1) + b1)
    h = jax.nn.selu(mm(h, w2) + b2)
    h = jax.nn.selu(mm(h, w3) + b3)
    logits = mm(h, wc) + bc
    return jax.nn.log_softmax(logits, axis=1)


if __name__ == "__main__":
    input_size = 16     # -> feature dim = 2*16 + 1 = 33 (padded to 128 once at prep)
    hidden_size = 32    # -> hidden dim  = 64 (padded to 128 once at prep)
    category_size = 10  # -> padded to 128 (bias-masked), sliced back to 10
    batch = 8

    key = jax.random.PRNGKey(0)
    kx, kp = jax.random.split(key)
    x = jax.random.normal(kx, (batch, input_size * 2 + 1), jnp.float32)
    params = init_params(kp, input_size, hidden_size, category_size)

    # One-time parameter pad + cast (hoisted out of the per-call path).
    prepared, meta = prepare_params(params)

    # Jitted forward: input pad + bf16 convert fuse into one pass.
    fwd = jax.jit(functools.partial(classifier_forward, prepared=prepared, meta=meta))

    out = jax.block_until_ready(fwd(x))
    assert out.shape == (batch, category_size)

    # Tight check against a reference using the same bf16 matmul inputs.
    ref_bf16 = reference_forward(x, params, mat_dtype=jnp.bfloat16)
    assert jnp.allclose(out, ref_bf16, atol=2e-3, rtol=2e-3), "mismatch vs bf16 reference"
    # Looser check against the full-f32 PyTorch-equivalent reference.
    ref_f32 = reference_forward(x, params, mat_dtype=jnp.float32)
    assert jnp.allclose(out, ref_f32, atol=1e-1, rtol=1e-1), "mismatch vs f32 reference"

    # Second config: larger, non-tile-multiple batch exercises the 2-step
    # "parallel" grid (tb=512, B_pad=1024) plus batch padding/slicing.
    batch2 = 1000
    x2 = jax.random.normal(jax.random.PRNGKey(1), (batch2, input_size * 2 + 1), jnp.float32)
    out2 = jax.block_until_ready(fwd(x2))
    ref2 = reference_forward(x2, params, mat_dtype=jnp.bfloat16)
    assert out2.shape == (batch2, category_size)
    assert jnp.allclose(out2, ref2, atol=2e-3, rtol=2e-3), "mismatch (large batch)"

    print("KERNEL_OK")
</pallas_src>

<mosaic_0001>
module attributes {stable_mosaic.version = 11 : i64} {
  func.func @classifier_kernel(%arg0: i32, %arg1: memref<16x128xbf16, #tpu.memory_space<vmem>>, %arg2: memref<128x128xbf16, #tpu.memory_space<vmem>>, %arg3: memref<1x128xf32, #tpu.memory_space<vmem>>, %arg4: memref<128x128xbf16, #tpu.memory_space<vmem>>, %arg5: memref<1x128xf32, #tpu.memory_space<vmem>>, %arg6: memref<128x128xbf16, #tpu.memory_space<vmem>>, %arg7: memref<1x128xf32, #tpu.memory_space<vmem>>, %arg8: memref<128x128xbf16, #tpu.memory_space<vmem>>, %arg9: memref<1x128xf32, #tpu.memory_space<vmem>>, %arg10: memref<16x128xf32, #tpu.memory_space<vmem>>) attributes {dimension_semantics = [#tpu.dimension_semantics<parallel>], iteration_bounds = array<i64: 1>, scalar_prefetch = 0 : i64, scratch_operands = 0 : i64, tpu.core_type = #tpu.core_type<tc>, window_params = [{transform_indices = @transform_0, window_bounds = array<i64: 16, 128>}, {pipeline_mode = #tpu.pipeline_mode<synchronous>, transform_indices = @transform_1, window_bounds = array<i64: 128, 128>}, {pipeline_mode = #tpu.pipeline_mode<synchronous>, transform_indices = @transform_2, window_bounds = array<i64: 1, 128>}, {pipeline_mode = #tpu.pipeline_mode<synchronous>, transform_indices = @transform_3, window_bounds = array<i64: 128, 128>}, {pipeline_mode = #tpu.pipeline_mode<synchronous>, transform_indices = @transform_4, window_bounds = array<i64: 1, 128>}, {pipeline_mode = #tpu.pipeline_mode<synchronous>, transform_indices = @transform_5, window_bounds = array<i64: 128, 128>}, {pipeline_mode = #tpu.pipeline_mode<synchronous>, transform_indices = @transform_6, window_bounds = array<i64: 1, 128>}, {pipeline_mode = #tpu.pipeline_mode<synchronous>, transform_indices = @transform_7, window_bounds = array<i64: 128, 128>}, {pipeline_mode = #tpu.pipeline_mode<synchronous>, transform_indices = @transform_8, window_bounds = array<i64: 1, 128>}, {transform_indices = @transform_9, window_bounds = array<i64: 16, 128>}]} {
    %c0 = arith.constant 0 : index
    %c0_0 = arith.constant 0 : index
    %0 = vector.load %arg1[%c0, %c0_0] : memref<16x128xbf16, #tpu.memory_space<vmem>>, vector<16x128xbf16>
    %c0_1 = arith.constant 0 : index
    %c0_2 = arith.constant 0 : index
    %1 = vector.load %arg2[%c0_1, %c0_2] : memref<128x128xbf16, #tpu.memory_space<vmem>>, vector<128x128xbf16>
    %cst = arith.constant dense<0.000000e+00> : vector<16x128xf32>
    %2 = tpu.matmul %0, %1, %cst {dimension_numbers = #tpu.dot_dimension_numbers<[1], [0], [0], [1], [0, 0, 1, 1], [], []>} : vector<16x128xbf16>, vector<128x128xbf16>, vector<16x128xf32> -> vector<16x128xf32>
    %c0_3 = arith.constant 0 : index
    %c0_4 = arith.constant 0 : index
    %3 = vector.load %arg3[%c0_3, %c0_4] : memref<1x128xf32, #tpu.memory_space<vmem>>, vector<1x128xf32>
    %4 = vector.broadcast %3 : vector<1x128xf32> to vector<16x128xf32>
    %5 = arith.addf %2, %4 : vector<16x128xf32>
    %cst_5 = arith.constant 0.000000e+00 : f32
    %6 = vector.broadcast %cst_5 : f32 to vector<16x128xf32>
    %7 = arith.minimumf %5, %6 : vector<16x128xf32>
    %8 = math.exp %7 : vector<16x128xf32>
    %cst_6 = arith.constant 1.000000e+00 : f32
    %9 = vector.broadcast %cst_6 : f32 to vector<16x128xf32>
    %10 = arith.subf %8, %9 : vector<16x128xf32>
    %cst_7 = arith.constant 1.67326319 : f32
    %11 = vector.broadcast %cst_7 : f32 to vector<16x128xf32>
    %12 = arith.mulf %11, %10 : vector<16x128xf32>
    %cst_8 = arith.constant 0.000000e+00 : f32
    %13 = vector.broadcast %cst_8 : f32 to vector<16x128xf32>
    %14 = arith.cmpf ogt, %5, %13 : vector<16x128xf32>
    %15 = arith.select %14, %5, %12 : vector<16x128xi1>, vector<16x128xf32>
    %cst_9 = arith.constant 1.05070102 : f32
    %16 = vector.broadcast %cst_9 : f32 to vector<16x128xf32>
    %17 = arith.mulf %16, %15 : vector<16x128xf32>
    %18 = arith.truncf %17 : vector<16x128xf32> to vector<16x128xbf16>
    %c0_10 = arith.constant 0 : index
    %c0_11 = arith.constant 0 : index
    %19 = vector.load %arg4[%c0_10, %c0_11] : memref<128x128xbf16, #tpu.memory_space<vmem>>, vector<128x128xbf16>
    %cst_12 = arith.constant dense<0.000000e+00> : vector<16x128xf32>
    %20 = tpu.matmul %18, %19, %cst_12 {dimension_numbers = #tpu.dot_dimension_numbers<[1], [0], [0], [1], [0, 0, 1, 1], [], []>} : vector<16x128xbf16>, vector<128x128xbf16>, vector<16x128xf32> -> vector<16x128xf32>
    %c0_13 = arith.constant 0 : index
    %c0_14 = arith.constant 0 : index
    %21 = vector.load %arg5[%c0_13, %c0_14] : memref<1x128xf32, #tpu.memory_space<vmem>>, vector<1x128xf32>
    %22 = vector.broadcast %21 : vector<1x128xf32> to vector<16x128xf32>
    %23 = arith.addf %20, %22 : vector<16x128xf32>
    %cst_15 = arith.constant 0.000000e+00 : f32
    %24 = vector.broadcast %cst_15 : f32 to vector<16x128xf32>
    %25 = arith.minimumf %23, %24 : vector<16x128xf32>
    %26 = math.exp %25 : vector<16x128xf32>
    %cst_16 = arith.constant 1.000000e+00 : f32
    %27 = vector.broadcast %cst_16 : f32 to vector<16x128xf32>
    %28 = arith.subf %26, %27 : vector<16x128xf32>
    %cst_17 = arith.constant 1.67326319 : f32
    %29 = vector.broadcast %cst_17 : f32 to vector<16x128xf32>
    %30 = arith.mulf %29, %28 : vector<16x128xf32>
    %cst_18 = arith.constant 0.000000e+00 : f32
    %31 = vector.broadcast %cst_18 : f32 to vector<16x128xf32>
    %32 = arith.cmpf ogt, %23, %31 : vector<16x128xf32>
    %33 = arith.select %32, %23, %30 : vector<16x128xi1>, vector<16x128xf32>
    %cst_19 = arith.constant 1.05070102 : f32
    %34 = vector.broadcast %cst_19 : f32 to vector<16x128xf32>
    %35 = arith.mulf %34, %33 : vector<16x128xf32>
    %36 = arith.truncf %35 : vector<16x128xf32> to vector<16x128xbf16>
    %c0_20 = arith.constant 0 : index
    %c0_21 = arith.constant 0 : index
    %37 = vector.load %arg6[%c0_20, %c0_21] : memref<128x128xbf16, #tpu.memory_space<vmem>>, vector<128x128xbf16>
    %cst_22 = arith.constant dense<0.000000e+00> : vector<16x128xf32>
    %38 = tpu.matmul %36, %37, %cst_22 {dimension_numbers = #tpu.dot_dimension_numbers<[1], [0], [0], [1], [0, 0, 1, 1], [], []>} : vector<16x128xbf16>, vector<128x128xbf16>, vector<16x128xf32> -> vector<16x128xf32>
    %c0_23 = arith.constant 0 : index
    %c0_24 = arith.constant 0 : index
    %39 = vector.load %arg7[%c0_23, %c0_24] : memref<1x128xf32, #tpu.memory_space<vmem>>, vector<1x128xf32>
    %40 = vector.broadcast %39 : vector<1x128xf32> to vector<16x128xf32>
    %41 = arith.addf %38, %40 : vector<16x128xf32>
    %cst_25 = arith.constant 0.000000e+00 : f32
    %42 = vector.broadcast %cst_25 : f32 to vector<16x128xf32>
    %43 = arith.minimumf %41, %42 : vector<16x128xf32>
    %44 = math.exp %43 : vector<16x128xf32>
    %cst_26 = arith.constant 1.000000e+00 : f32
    %45 = vector.broadcast %cst_26 : f32 to vector<16x128xf32>
    %46 = arith.subf %44, %45 : vector<16x128xf32>
    %cst_27 = arith.constant 1.67326319 : f32
    %47 = vector.broadcast %cst_27 : f32 to vector<16x128xf32>
    %48 = arith.mulf %47, %46 : vector<16x128xf32>
    %cst_28 = arith.constant 0.000000e+00 : f32
    %49 = vector.broadcast %cst_28 : f32 to vector<16x128xf32>
    %50 = arith.cmpf ogt, %41, %49 : vector<16x128xf32>
    %51 = arith.select %50, %41, %48 : vector<16x128xi1>, vector<16x128xf32>
    %cst_29 = arith.constant 1.05070102 : f32
    %52 = vector.broadcast %cst_29 : f32 to vector<16x128xf32>
    %53 = arith.mulf %52, %51 : vector<16x128xf32>
    %54 = arith.truncf %53 : vector<16x128xf32> to vector<16x128xbf16>
    %c0_30 = arith.constant 0 : index
    %c0_31 = arith.constant 0 : index
    %55 = vector.load %arg8[%c0_30, %c0_31] : memref<128x128xbf16, #tpu.memory_space<vmem>>, vector<128x128xbf16>
    %cst_32 = arith.constant dense<0.000000e+00> : vector<16x128xf32>
    %56 = tpu.matmul %54, %55, %cst_32 {dimension_numbers = #tpu.dot_dimension_numbers<[1], [0], [0], [1], [0, 0, 1, 1], [], []>} : vector<16x128xbf16>, vector<128x128xbf16>, vector<16x128xf32> -> vector<16x128xf32>
    %c0_33 = arith.constant 0 : index
    %c0_34 = arith.constant 0 : index
    %57 = vector.load %arg9[%c0_33, %c0_34] : memref<1x128xf32, #tpu.memory_space<vmem>>, vector<1x128xf32>
    %58 = vector.broadcast %57 : vector<1x128xf32> to vector<16x128xf32>
    %59 = arith.addf %56, %58 : vector<16x128xf32>
    %cst_35 = arith.constant dense<0xFF800000> : vector<16xf32>
    %60 = vector.multi_reduction <maximumf>, %59, %cst_35 [1] : vector<16x128xf32> to vector<16xf32>
    %61 = vector.shape_cast %60 : vector<16xf32> to vector<16x1xf32>
    %62 = vector.broadcast %61 : vector<16x1xf32> to vector<16x128xf32>
    %63 = arith.subf %59, %62 : vector<16x128xf32>
    %64 = math.exp %63 : vector<16x128xf32>
    %cst_36 = arith.constant dense<0.000000e+00> : vector<16xf32>
    %65 = vector.multi_reduction <add>, %64, %cst_36 [1] : vector<16x128xf32> to vector<16xf32>
    %66 = vector.shape_cast %65 : vector<16xf32> to vector<16x1xf32>
    %67 = math.log %66 : vector<16x1xf32>
    %68 = arith.addf %67, %61 : vector<16x1xf32>
    %69 = vector.broadcast %68 : vector<16x1xf32> to vector<16x128xf32>
    %70 = arith.subf %59, %69 : vector<16x128xf32>
    %c0_37 = arith.constant 0 : index
    %c0_38 = arith.constant 0 : index
    %71 = vector.load %arg10[%c0_37, %c0_38] : memref<16x128xf32, #tpu.memory_space<vmem>>, vector<16x128xf32>
    tpu.vector_store %arg10[%c0_37, %c0_38], %70 {strides = array<i32>} : memref<16x128xf32, #tpu.memory_space<vmem>>, vector<16x128xf32>,
    return
  }
  func.func @transform_0(%arg0: i32) -> (i32, i32) {
    %c0_i32 = arith.constant 0 : i32
    %c0_i32_0 = arith.constant 0 : i32
    return %arg0, %c0_i32 : i32, i32
  }
  func.func @transform_1(%arg0: i32) -> (i32, i32) {
    %c0_i32 = arith.constant 0 : i32
    %c0_i32_0 = arith.constant 0 : i32
    %c0_i32_1 = arith.constant 0 : i32
    return %c0_i32, %c0_i32_0 : i32, i32
  }
  func.func @transform_2(%arg0: i32) -> (i32, i32) {
    %c0_i32 = arith.constant 0 : i32
    %c0_i32_0 = arith.constant 0 : i32
    %c0_i32_1 = arith.constant 0 : i32
    return %c0_i32, %c0_i32_0 : i32, i32
  }
  func.func @transform_3(%arg0: i32) -> (i32, i32) {
    %c0_i32 = arith.constant 0 : i32
    %c0_i32_0 = arith.constant 0 : i32
    %c0_i32_1 = arith.constant 0 : i32
    return %c0_i32, %c0_i32_0 : i32, i32
  }
  func.func @transform_4(%arg0: i32) -> (i32, i32) {
    %c0_i32 = arith.constant 0 : i32
    %c0_i32_0 = arith.constant 0 : i32
    %c0_i32_1 = arith.constant 0 : i32
    return %c0_i32, %c0_i32_0 : i32, i32
  }
  func.func @transform_5(%arg0: i32) -> (i32, i32) {
    %c0_i32 = arith.constant 0 : i32
    %c0_i32_0 = arith.constant 0 : i32
    %c0_i32_1 = arith.constant 0 : i32
    return %c0_i32, %c0_i32_0 : i32, i32
  }
  func.func @transform_6(%arg0: i32) -> (i32, i32) {
    %c0_i32 = arith.constant 0 : i32
    %c0_i32_0 = arith.constant 0 : i32
    %c0_i32_1 = arith.constant 0 : i32
    return %c0_i32, %c0_i32_0 : i32, i32
  }
  func.func @transform_7(%arg0: i32) -> (i32, i32) {
    %c0_i32 = arith.constant 0 : i32
    %c0_i32_0 = arith.constant 0 : i32
    %c0_i32_1 = arith.constant 0 : i32
    return %c0_i32, %c0_i32_0 : i32, i32
  }
  func.func @transform_8(%arg0: i32) -> (i32, i32) {
    %c0_i32 = arith.constant 0 : i32
    %c0_i32_0 = arith.constant 0 : i32
    %c0_i32_1 = arith.constant 0 : i32
    return %c0_i32, %c0_i32_0 : i32, i32
  }
  func.func @transform_9(%arg0: i32) -> (i32, i32) {
    %c0_i32 = arith.constant 0 : i32
    %c0_i32_0 = arith.constant 0 : i32
    return %arg0, %c0_i32 : i32, i32
  }
}

</mosaic_0001>

<llo_original>
// kernel: classifier_forward.1
$region0: #{classifier_forward.1}
  #allocation0 [shape = 'u32[]', space=smem, size = 0x4, offset = 0x4, fixed_abs, tag = 'smem constant byte address 0x4 - core index']
  #allocation1 [shape = 'u32[144,128]{1,0:T(1,128)}', space=vmem, size = 0x12000, scoped, tag = 'internal scratch']
  %s0 = inlined_call_operand.vmem [shape: bf16[16,128], index: 0, kind: input, shape index: {}]
  %s1 = inlined_call_operand.hbm [shape: bf16[128,128], index: 1, kind: input, shape index: {}]
  %s2 = inlined_call_operand.vmem [shape: f32[1,128], index: 2, kind: input, shape index: {}]
  %s3 = inlined_call_operand.hbm [shape: bf16[128,128], index: 3, kind: input, shape index: {}]
  %s4 = inlined_call_operand.vmem [shape: f32[1,128], index: 4, kind: input, shape index: {}]
  %s5 = inlined_call_operand.hbm [shape: bf16[128,128], index: 5, kind: input, shape index: {}]
  %s6 = inlined_call_operand.vmem [shape: f32[1,128], index: 6, kind: input, shape index: {}]
  %s7 = inlined_call_operand.vmem [shape: bf16[128,128], index: 7, kind: input, shape index: {}]
  %s8 = inlined_call_operand.vmem [shape: f32[1,128], index: 8, kind: input, shape index: {}]
  %s9 = inlined_call_operand.vmem [shape: f32[16,128], index: 9, kind: output, shape index: {}]
  %s10 = sld [smem:[#allocation0]]
  $region58: #{classifier_forward.1} parent=0
    _
  %s12 = ssub.s32 1, %s10
  %s13 = scalar_select 0, %s12, %s10
  $region1: #{classifier_forward.1} parent=0
    #allocation2 [shape = 'u8[32768]{0}', space=vmem, size = 0x8000, scoped, tag = 'input window, operand 1, single buffered']
    #allocation3 [shape = 's32[1]{0}', space=sflag, size = 0x4, scoped, tag = 'scoped memory for classifier_forward.1']
    #allocation4 [shape = 'u8[32768]{0}', space=vmem, size = 0x8000, scoped, tag = 'input window, operand 3, single buffered']
    #allocation5 [shape = 's32[1]{0}', space=sflag, size = 0x4, scoped, tag = 'scoped memory for classifier_forward.1']
    #allocation6 [shape = 'u8[32768]{0}', space=vmem, size = 0x8000, scoped, tag = 'input window, operand 5, single buffered']
    %14 = vsyncpa [#allocation3], 0
    %15 = vsyncpa [#allocation5], 0
    // Predicated region
    $region2: #{classifier_forward.1} parent=1 // pred_check
      _
    $region3: #{classifier_forward.1} parent=1 // pred_check_branch
      %17 = sbr.rel (0) target = $region5
    $region4: #{classifier_forward.1} parent=1 // pred_region
      _
    $region5: #{classifier_forward.1} parent=1 // pred_fallthru
      _
    // Predicated region
    $region6: #{classifier_forward.1} parent=1 // pred_check
      _
    $region7: #{classifier_forward.1} parent=1 // pred_check_branch
      %19 = sbr.rel (0) target = $region9
    $region8: #{classifier_forward.1} parent=1 // pred_region
      %s21 = ssub.s32 1024, 1024
      %22 = vsyncadd [#allocation3], %s21
      %s23 = sshll.u32 [#allocation2], 4
      %s24 = int_to_ptr.vmem [resolvable:$true] %s23
      %29 = dma.hbm_to_vmem [thread:$0]  %s1, 1024, %s24, [#allocation3], 64, 64, 4
    $region9: #{classifier_forward.1} parent=1 // pred_fallthru
      _
    // Predicated region
    $region10: #{classifier_forward.1} parent=1 // pred_check
      _
    $region11: #{classifier_forward.1} parent=1 // pred_check_branch
      %31 = sbr.rel (0) target = $region13
    $region12: #{classifier_forward.1} parent=1 // pred_region
      _
    $region13: #{classifier_forward.1} parent=1 // pred_fallthru
      _
    // Predicated region
    $region14: #{classifier_forward.1} parent=1 // pred_check
      _
    $region15: #{classifier_forward.1} parent=1 // pred_check_branch
      %33 = sbr.rel (0) target = $region17
    $region16: #{classifier_forward.1} parent=1 // pred_region
      %s35 = ssub.s32 1024, 1024
      %36 = vsyncadd [#allocation5], %s35
      %s37 = sshll.u32 [#allocation4], 4
      %s38 = int_to_ptr.vmem [resolvable:$true] %s37
      %43 = dma.hbm_to_vmem [thread:$0]  %s3, 1024, %s38, [#allocation5], 64, 64, 4
    $region17: #{classifier_forward.1} parent=1 // pred_fallthru
      _
    // Predicated region
    $region18: #{classifier_forward.1} parent=1 // pred_check
      _
    $region19: #{classifier_forward.1} parent=1 // pred_check_branch
      %45 = sbr.rel (0) target = $region21
    $region20: #{classifier_forward.1} parent=1 // pred_region
      _
    $region21: #{classifier_forward.1} parent=1 // pred_fallthru
      _
    // Predicated region
    $region22: #{classifier_forward.1} parent=1 // pred_check
      _
    $region23: #{classifier_forward.1} parent=1 // pred_check_branch
      %47 = sbr.rel (0) target = $region25
    $region24: #{classifier_forward.1} parent=1 // pred_region
      %s49 = ssub.s32 1024, 1024
      %50 = vsyncadd [#allocation5], %s49
      %s51 = sshll.u32 [#allocation6], 4
      %s52 = int_to_ptr.vmem [resolvable:$true] %s51
      %57 = dma.hbm_to_vmem [thread:$0]  %s5, 1024, %s52, [#allocation5], 64, 64, 4
    $region25: #{classifier_forward.1} parent=1 // pred_fallthru
      _
    // Predicated region
    $region26: #{classifier_forward.1} parent=1 // pred_check
      _
    $region27: #{classifier_forward.1} parent=1 // pred_check_branch
      %59 = sbr.rel (0) target = $region29
    $region28: #{classifier_forward.1} parent=1 // pred_region
      _
    $region29: #{classifier_forward.1} parent=1 // pred_fallthru
      _
    // Predicated region
    $region30: #{classifier_forward.1} parent=1 // pred_check
      _
    $region31: #{classifier_forward.1} parent=1 // pred_check_branch
      %61 = sbr.rel (0) target = $region33
    $region32: #{classifier_forward.1} parent=1 // pred_region
      _
    $region33: #{classifier_forward.1} parent=1 // pred_fallthru
      _
    // Predicated region
    $region34: #{classifier_forward.1} parent=1 // pred_check
      _
    $region35: #{classifier_forward.1} parent=1 // pred_check_branch
      %63 = sbr.rel (0) target = $region37
    $region36: #{classifier_forward.1} parent=1 // pred_region
      _
    $region37: #{classifier_forward.1} parent=1 // pred_fallthru
      _
    // Predicated region
    $region38: #{classifier_forward.1} parent=1 // pred_check
      _
    $region39: #{classifier_forward.1} parent=1 // pred_check_branch
      %65 = sbr.rel (0) target = $region41
    $region40: #{classifier_forward.1} parent=1 // pred_region
      %66 = dma.done [#allocation3], 1024
    $region41: #{classifier_forward.1} parent=1 // pred_fallthru
      _
    // Predicated region
    $region42: #{classifier_forward.1} parent=1 // pred_check
      _
    $region43: #{classifier_forward.1} parent=1 // pred_check_branch
      %68 = sbr.rel (0) target = $region45
    $region44: #{classifier_forward.1} parent=1 // pred_region
      %69 = dma.done [#allocation5], 1024
    $region45: #{classifier_forward.1} parent=1 // pred_fallthru
      _
    // Predicated region
    $region46: #{classifier_forward.1} parent=1 // pred_check
      _
    $region47: #{classifier_forward.1} parent=1 // pred_check_branch
      %71 = sbr.rel (0) target = $region49
    $region48: #{classifier_forward.1} parent=1 // pred_region
      %72 = dma.done [#allocation5], 1024
    $region49: #{classifier_forward.1} parent=1 // pred_fallthru
      _
    %v74 = vld [vmem:[%s0] sm:$0xf]
    %v75 = vld [vmem:[%s0 + $0x4] sm:$0xf]
    %v76 = vld [vmem:[#allocation2] sm:$0xf]
    %v77 = vld [vmem:[#allocation2 + $0x4] sm:$0xf]
    %v78 = vld [vmem:[#allocation2 + $0x8] sm:$0xf]
    %v79 = vld [vmem:[#allocation2 + $0xc] sm:$0xf]
    %v80 = vld [vmem:[#allocation2 + $0x10] sm:$0xf]
    %v81 = vld [vmem:[#allocation2 + $0x14] sm:$0xf]
    %v82 = vld [vmem:[#allocation2 + $0x18] sm:$0xf]
    %v83 = vld [vmem:[#allocation2 + $0x1c] sm:$0xf]
    %v84 = vld [vmem:[#allocation2 + $0x20] sm:$0xf]
    %v85 = vld [vmem:[#allocation2 + $0x24] sm:$0xf]
    %v86 = vld [vmem:[#allocation2 + $0x28] sm:$0xf]
    %v87 = vld [vmem:[#allocation2 + $0x2c] sm:$0xf]
    %v88 = vld [vmem:[#allocation2 + $0x30] sm:$0xf]
    %v89 = vld [vmem:[#allocation2 + $0x34] sm:$0xf]
    %v90 = vld [vmem:[#allocation2 + $0x38] sm:$0xf]
    %v91 = vld [vmem:[#allocation2 + $0x3c] sm:$0xf]
    %v92 = vld [vmem:[%s2] sm:$0x1]
    %v94 = vlaneseq
    %v95 = vshrl.u32 %v94, 7
    %v96 = vsub.s32 0, %v95
    %v97 = vrot.slane %v92, %v96
    %v101 = vunpack.c.l.b16 %v74
    %v102 = vunpack.c.l.b16 %v75
    %v103 = vpack.c.b16 %v102, %v101
    %v121 = vunpack.c.l.b16 %v76
    %v122 = vunpack.c.l.b16 %v77
    %v123 = vunpack.c.l.b16 %v78
    %v124 = vunpack.c.l.b16 %v79
    %v125 = vunpack.c.l.b16 %v80
    %v126 = vunpack.c.l.b16 %v81
    %v127 = vunpack.c.l.b16 %v82
    %v128 = vunpack.c.l.b16 %v83
    %v129 = vunpack.c.l.b16 %v84
    %v130 = vunpack.c.l.b16 %v85
    %v131 = vunpack.c.l.b16 %v86
    %v132 = vunpack.c.l.b16 %v87
    %v133 = vunpack.c.l.b16 %v88
    %v134 = vunpack.c.l.b16 %v89
    %v135 = vunpack.c.l.b16 %v90
    %v136 = vunpack.c.l.b16 %v91
    %v137 = vpack.c.b16 %v122, %v121
    %v138 = vpack.c.b16 %v124, %v123
    %v139 = vpack.c.b16 %v126, %v125
    %v140 = vpack.c.b16 %v128, %v127
    %v141 = vpack.c.b16 %v130, %v129
    %v142 = vpack.c.b16 %v132, %v131
    %v143 = vpack.c.b16 %v134, %v133
    %v144 = vpack.c.b16 %v136, %v135
    %153 = vmatprep.subr.bf16.mxu0 0
    %154 = vmatpush1.bf16.msra.mxu0 %v137
    %155 = vmatprep.subr.bf16.mxu0 0
    %156 = vmatpush1.bf16.msra.mxu0 %v138
    %157 = vmatprep.subr.bf16.mxu0 0
    %158 = vmatpush1.bf16.msra.mxu0 %v139
    %159 = vmatprep.subr.bf16.mxu0 0
    %160 = vmatpush1.bf16.msra.mxu0 %v140
    %161 = vmatprep.subr.bf16.mxu0 0
    %162 = vmatpush1.bf16.msra.mxu0 %v141
    %163 = vmatprep.subr.bf16.mxu0 0
    %164 = vmatpush1.bf16.msra.mxu0 %v142
    %165 = vmatprep.subr.bf16.mxu0 0
    %166 = vmatpush1.bf16.msra.mxu0 %v143
    %167 = vmatprep.subr.bf16.mxu0 0
    %168 = vmatpush1.bf16.msra.mxu0 %v144
    %169 = vmatprep.subr.bf16.mxu0 0
    %170 = vmatpush1.bf16.msra.mxu0 0
    %171 = vmatprep.subr.bf16.mxu0 0
    %172 = vmatpush1.bf16.msra.mxu0 0
    %173 = vmatprep.subr.bf16.mxu0 0
    %174 = vmatpush1.bf16.msra.mxu0 0
    %175 = vmatprep.subr.bf16.mxu0 0
    %176 = vmatpush1.bf16.msra.mxu0 0
    %177 = vmatprep.subr.bf16.mxu0 0
    %178 = vmatpush1.bf16.msra.mxu0 0
    %179 = vmatprep.subr.bf16.mxu0 0
    %180 = vmatpush1.bf16.msra.mxu0 0
    %181 = vmatprep.subr.bf16.mxu0 0
    %182 = vmatpush1.bf16.msra.mxu0 0
    %183 = vmatprep.subr.bf16.mxu0 0
    %184 = vmatpush1.bf16.msra.mxu0 0
    %185 = vmatprep.mubr.bf16.mxu0 0
    %186 = vmatmul.mubr.bf16.gmra.mrb[0].mxu0 %v103
    %v187 = vpop.f32.mrb[0].mxu0
    %v188 = vadd.f32 %v97, %v187
    %v189 = vpop.f32.mrb[0].mxu0
    %v190 = vpop.f32.mrb[0].mxu0
    %v191 = vadd.f32 %v97, %v190
    %v192 = vpop.f32.mrb[0].mxu0
    %193 = vdwg.mxu0
    %v194 = vmin.f32 %v188, 0.0
    %v195 = vmin.f32 %v191, 0.0
    %v196 = vmul.f32 %v194, 1.442695
    %v197 = vpow.pop %v196
    %v198 = vmul.f32 %v195, 1.442695
    %v199 = vpow.pop %v198
    %v200 = vsub.f32 %v197, 1.0
    %v201 = vsub.f32 %v199, 1.0
    %v202 = vmul.f32 %v200, 1.6732632
    %v203 = vmul.f32 %v201, 1.6732632
    %vm204 = vcmp.gt.f32.partialorder %v188, 0.0
    %vm205 = vcmp.gt.f32.partialorder %v191, 0.0
    %v206 = vsel %vm204, %v188, %v202
    %v207 = vsel %vm205, %v191, %v203
    %v208 = vmul.f32 %v206, 1.050701
    %v209 = vmul.f32 %v207, 1.050701
    %v210 = vpack.c.bf16 %v209, %v208
    %v211 = vld [vmem:[#allocation4] sm:$0xf]
    %v212 = vld [vmem:[#allocation4 + $0x4] sm:$0xf]
    %v213 = vld [vmem:[#allocation4 + $0x8] sm:$0xf]
    %v214 = vld [vmem:[#allocation4 + $0xc] sm:$0xf]
    %v215 = vld [vmem:[#allocation4 + $0x10] sm:$0xf]
    %v216 = vld [vmem:[#allocation4 + $0x14] sm:$0xf]
    %v217 = vld [vmem:[#allocation4 + $0x18] sm:$0xf]
    %v218 = vld [vmem:[#allocation4 + $0x1c] sm:$0xf]
    %v219 = vld [vmem:[#allocation4 + $0x20] sm:$0xf]
    %v220 = vld [vmem:[#allocation4 + $0x24] sm:$0xf]
    %v221 = vld [vmem:[#allocation4 + $0x28] sm:$0xf]
    %v222 = vld [vmem:[#allocation4 + $0x2c] sm:$0xf]
    %v223 = vld [vmem:[#allocation4 + $0x30] sm:$0xf]
    %v224 = vld [vmem:[#allocation4 + $0x34] sm:$0xf]
    %v225 = vld [vmem:[#allocation4 + $0x38] sm:$0xf]
    %v226 = vld [vmem:[#allocation4 + $0x3c] sm:$0xf]
    %v227 = vld [vmem:[%s4] sm:$0x1]
    %v229 = vlaneseq
    %v230 = vshrl.u32 %v229, 7
    %v231 = vsub.s32 0, %v230
    %v232 = vrot.slane %v227, %v231
    %v250 = vunpack.c.l.b16 %v211
    %v251 = vunpack.c.l.b16 %v212
    %v252 = vunpack.c.l.b16 %v213
    %v253 = vunpack.c.l.b16 %v214
    %v254 = vunpack.c.l.b16 %v215
    %v255 = vunpack.c.l.b16 %v216
    %v256 = vunpack.c.l.b16 %v217
    %v257 = vunpack.c.l.b16 %v218
    %v258 = vunpack.c.l.b16 %v219
    %v259 = vunpack.c.l.b16 %v220
    %v260 = vunpack.c.l.b16 %v221
    %v261 = vunpack.c.l.b16 %v222
    %v262 = vunpack.c.l.b16 %v223
    %v263 = vunpack.c.l.b16 %v224
    %v264 = vunpack.c.l.b16 %v225
    %v265 = vunpack.c.l.b16 %v226
    %v266 = vpack.c.b16 %v251, %v250
    %v267 = vpack.c.b16 %v253, %v252
    %v268 = vpack.c.b16 %v255, %v254
    %v269 = vpack.c.b16 %v257, %v256
    %v270 = vpack.c.b16 %v259, %v258
    %v271 = vpack.c.b16 %v261, %v260
    %v272 = vpack.c.b16 %v263, %v262
    %v273 = vpack.c.b16 %v265, %v264
    %282 = vmatprep.subr.bf16.mxu0 0
    %283 = vmatpush1.bf16.msra.mxu0 %v266
    %284 = vmatprep.subr.bf16.mxu0 0
    %285 = vmatpush1.bf16.msra.mxu0 %v267
    %286 = vmatprep.subr.bf16.mxu0 0
    %287 = vmatpush1.bf16.msra.mxu0 %v268
    %288 = vmatprep.subr.bf16.mxu0 0
    %289 = vmatpush1.bf16.msra.mxu0 %v269
    %290 = vmatprep.subr.bf16.mxu0 0
    %291 = vmatpush1.bf16.msra.mxu0 %v270
    %292 = vmatprep.subr.bf16.mxu0 0
    %293 = vmatpush1.bf16.msra.mxu0 %v271
    %294 = vmatprep.subr.bf16.mxu0 0
    %295 = vmatpush1.bf16.msra.mxu0 %v272
    %296 = vmatprep.subr.bf16.mxu0 0
    %297 = vmatpush1.bf16.msra.mxu0 %v273
    %298 = vmatprep.subr.bf16.mxu0 0
    %299 = vmatpush1.bf16.msra.mxu0 0
    %300 = vmatprep.subr.bf16.mxu0 0
    %301 = vmatpush1.bf16.msra.mxu0 0
    %302 = vmatprep.subr.bf16.mxu0 0
    %303 = vmatpush1.bf16.msra.mxu0 0
    %304 = vmatprep.subr.bf16.mxu0 0
    %305 = vmatpush1.bf16.msra.mxu0 0
    %306 = vmatprep.subr.bf16.mxu0 0
    %307 = vmatpush1.bf16.msra.mxu0 0
    %308 = vmatprep.subr.bf16.mxu0 0
    %309 = vmatpush1.bf16.msra.mxu0 0
    %310 = vmatprep.subr.bf16.mxu0 0
    %311 = vmatpush1.bf16.msra.mxu0 0
    %312 = vmatprep.subr.bf16.mxu0 0
    %313 = vmatpush1.bf16.msra.mxu0 0
    %314 = vmatprep.mubr.bf16.mxu0 0
    %315 = vmatmul.mubr.bf16.gmra.mrb[0].mxu0 %v210
    %v316 = vpop.f32.mrb[0].mxu0
    %v317 = vadd.f32 %v232, %v316
    %v318 = vpop.f32.mrb[0].mxu0
    %v319 = vpop.f32.mrb[0].mxu0
    %v320 = vadd.f32 %v232, %v319
    %v321 = vpop.f32.mrb[0].mxu0
    %322 = vdwg.mxu0
    %v323 = vmin.f32 %v317, 0.0
    %v324 = vmin.f32 %v320, 0.0
    %v325 = vmul.f32 %v323, 1.442695
    %v326 = vpow.pop %v325
    %v327 = vmul.f32 %v324, 1.442695
    %v328 = vpow.pop %v327
    %v329 = vsub.f32 %v326, 1.0
    %v330 = vsub.f32 %v328, 1.0
    %v331 = vmul.f32 %v329, 1.6732632
    %v332 = vmul.f32 %v330, 1.6732632
    %vm333 = vcmp.gt.f32.partialorder %v317, 0.0
    %vm334 = vcmp.gt.f32.partialorder %v320, 0.0
    %v335 = vsel %vm333, %v317, %v331
    %v336 = vsel %vm334, %v320, %v332
    %v337 = vmul.f32 %v335, 1.050701
    %v338 = vmul.f32 %v336, 1.050701
    %v339 = vpack.c.bf16 %v338, %v337
    %v340 = vld [vmem:[#allocation6] sm:$0xf]
    %v341 = vld [vmem:[#allocation6 + $0x4] sm:$0xf]
    %v342 = vld [vmem:[#allocation6 + $0x8] sm:$0xf]
    %v343 = vld [vmem:[#allocation6 + $0xc] sm:$0xf]
    %v344 = vld [vmem:[#allocation6 + $0x10] sm:$0xf]
    %v345 = vld [vmem:[#allocation6 + $0x14] sm:$0xf]
    %v346 = vld [vmem:[#allocation6 + $0x18] sm:$0xf]
    %v347 = vld [vmem:[#allocation6 + $0x1c] sm:$0xf]
    %v348 = vld [vmem:[#allocation6 + $0x20] sm:$0xf]
    %v349 = vld [vmem:[#allocation6 + $0x24] sm:$0xf]
    %v350 = vld [vmem:[#allocation6 + $0x28] sm:$0xf]
    %v351 = vld [vmem:[#allocation6 + $0x2c] sm:$0xf]
    %v352 = vld [vmem:[#allocation6 + $0x30] sm:$0xf]
    %v353 = vld [vmem:[#allocation6 + $0x34] sm:$0xf]
    %v354 = vld [vmem:[#allocation6 + $0x38] sm:$0xf]
    %v355 = vld [vmem:[#allocation6 + $0x3c] sm:$0xf]
    %v356 = vld [vmem:[%s6] sm:$0x1]
    %v358 = vlaneseq
    %v359 = vshrl.u32 %v358, 7
    %v360 = vsub.s32 0, %v359
    %v361 = vrot.slane %v356, %v360
    %v379 = vunpack.c.l.b16 %v340
    %v380 = vunpack.c.l.b16 %v341
    %v381 = vunpack.c.l.b16 %v342
    %v382 = vunpack.c.l.b16 %v343
    %v383 = vunpack.c.l.b16 %v344
    %v384 = vunpack.c.l.b16 %v345
    %v385 = vunpack.c.l.b16 %v346
    %v386 = vunpack.c.l.b16 %v347
    %v387 = vunpack.c.l.b16 %v348
    %v388 = vunpack.c.l.b16 %v349
    %v389 = vunpack.c.l.b16 %v350
    %v390 = vunpack.c.l.b16 %v351
    %v391 = vunpack.c.l.b16 %v352
    %v392 = vunpack.c.l.b16 %v353
    %v393 = vunpack.c.l.b16 %v354
    %v394 = vunpack.c.l.b16 %v355
    %v395 = vpack.c.b16 %v380, %v379
    %v396 = vpack.c.b16 %v382, %v381
    %v397 = vpack.c.b16 %v384, %v383
    %v398 = vpack.c.b16 %v386, %v385
    %v399 = vpack.c.b16 %v388, %v387
    %v400 = vpack.c.b16 %v390, %v389
    %v401 = vpack.c.b16 %v392, %v391
    %v402 = vpack.c.b16 %v394, %v393
    %411 = vmatprep.subr.bf16.mxu0 0
    %412 = vmatpush1.bf16.msra.mxu0 %v395
    %413 = vmatprep.subr.bf16.mxu0 0
    %414 = vmatpush1.bf16.msra.mxu0 %v396
    %415 = vmatprep.subr.bf16.mxu0 0
    %416 = vmatpush1.bf16.msra.mxu0 %v397
    %417 = vmatprep.subr.bf16.mxu0 0
    %418 = vmatpush1.bf16.msra.mxu0 %v398
    %419 = vmatprep.subr.bf16.mxu0 0
    %420 = vmatpush1.bf16.msra.mxu0 %v399
    %421 = vmatprep.subr.bf16.mxu0 0
    %422 = vmatpush1.bf16.msra.mxu0 %v400
    %423 = vmatprep.subr.bf16.mxu0 0
    %424 = vmatpush1.bf16.msra.mxu0 %v401
    %425 = vmatprep.subr.bf16.mxu0 0
    %426 = vmatpush1.bf16.msra.mxu0 %v402
    %427 = vmatprep.subr.bf16.mxu0 0
    %428 = vmatpush1.bf16.msra.mxu0 0
    %429 = vmatprep.subr.bf16.mxu0 0
    %430 = vmatpush1.bf16.msra.mxu0 0
    %431 = vmatprep.subr.bf16.mxu0 0
    %432 = vmatpush1.bf16.msra.mxu0 0
    %433 = vmatprep.subr.bf16.mxu0 0
    %434 = vmatpush1.bf16.msra.mxu0 0
    %435 = vmatprep.subr.bf16.mxu0 0
    %436 = vmatpush1.bf16.msra.mxu0 0
    %437 = vmatprep.subr.bf16.mxu0 0
    %438 = vmatpush1.bf16.msra.mxu0 0
    %439 = vmatprep.subr.bf16.mxu0 0
    %440 = vmatpush1.bf16.msra.mxu0 0
    %441 = vmatprep.subr.bf16.mxu0 0
    %442 = vmatpush1.bf16.msra.mxu0 0
    %443 = vmatprep.mubr.bf16.mxu0 0
    %444 = vmatmul.mubr.bf16.gmra.mrb[0].mxu0 %v339
    %v445 = vpop.f32.mrb[0].mxu0
    %v446 = vadd.f32 %v361, %v445
    %v447 = vpop.f32.mrb[0].mxu0
    %v448 = vpop.f32.mrb[0].mxu0
    %v449 = vadd.f32 %v361, %v448
    %v450 = vpop.f32.mrb[0].mxu0
    %451 = vdwg.mxu0
    %v452 = vmin.f32 %v446, 0.0
    %v453 = vmin.f32 %v449, 0.0
    %v454 = vmul.f32 %v452, 1.442695
    %v455 = vpow.pop %v454
    %v456 = vmul.f32 %v453, 1.442695
    %v457 = vpow.pop %v456
    %v458 = vsub.f32 %v455, 1.0
    %v459 = vsub.f32 %v457, 1.0
    %v460 = vmul.f32 %v458, 1.6732632
    %v461 = vmul.f32 %v459, 1.6732632
    %vm462 = vcmp.gt.f32.partialorder %v446, 0.0
    %vm463 = vcmp.gt.f32.partialorder %v449, 0.0
    %v464 = vsel %vm462, %v446, %v460
    %v465 = vsel %vm463, %v449, %v461
    %v466 = vmul.f32 %v464, 1.050701
    %v467 = vmul.f32 %v465, 1.050701
    %v468 = vpack.c.bf16 %v467, %v466
    %v469 = vld [vmem:[%s7] sm:$0xf]
    %v470 = vld [vmem:[%s7 + $0x4] sm:$0xf]
    %v471 = vld [vmem:[%s7 + $0x8] sm:$0xf]
    %v472 = vld [vmem:[%s7 + $0xc] sm:$0xf]
    %v473 = vld [vmem:[%s7 + $0x10] sm:$0xf]
    %v474 = vld [vmem:[%s7 + $0x14] sm:$0xf]
    %v475 = vld [vmem:[%s7 + $0x18] sm:$0xf]
    %v476 = vld [vmem:[%s7 + $0x1c] sm:$0xf]
    %v477 = vld [vmem:[%s7 + $0x20] sm:$0xf]
    %v478 = vld [vmem:[%s7 + $0x24] sm:$0xf]
    %v479 = vld [vmem:[%s7 + $0x28] sm:$0xf]
    %v480 = vld [vmem:[%s7 + $0x2c] sm:$0xf]
    %v481 = vld [vmem:[%s7 + $0x30] sm:$0xf]
    %v482 = vld [vmem:[%s7 + $0x34] sm:$0xf]
    %v483 = vld [vmem:[%s7 + $0x38] sm:$0xf]
    %v484 = vld [vmem:[%s7 + $0x3c] sm:$0xf]
    %v485 = vld [vmem:[%s8] sm:$0x1]
    %v487 = vlaneseq
    %v488 = vshrl.u32 %v487, 7
    %v489 = vsub.s32 0, %v488
    %v490 = vrot.slane %v485, %v489
    %v508 = vunpack.c.l.b16 %v469
    %v509 = vunpack.c.l.b16 %v470
    %v510 = vunpack.c.l.b16 %v471
    %v511 = vunpack.c.l.b16 %v472
    %v512 = vunpack.c.l.b16 %v473
    %v513 = vunpack.c.l.b16 %v474
    %v514 = vunpack.c.l.b16 %v475
    %v515 = vunpack.c.l.b16 %v476
    %v516 = vunpack.c.l.b16 %v477
    %v517 = vunpack.c.l.b16 %v478
    %v518 = vunpack.c.l.b16 %v479
    %v519 = vunpack.c.l.b16 %v480
    %v520 = vunpack.c.l.b16 %v481
    %v521 = vunpack.c.l.b16 %v482
    %v522 = vunpack.c.l.b16 %v483
    %v523 = vunpack.c.l.b16 %v484
    %v524 = vpack.c.b16 %v509, %v508
    %v525 = vpack.c.b16 %v511, %v510
    %v526 = vpack.c.b16 %v513, %v512
    %v527 = vpack.c.b16 %v515, %v514
    %v528 = vpack.c.b16 %v517, %v516
    %v529 = vpack.c.b16 %v519, %v518
    %v530 = vpack.c.b16 %v521, %v520
    %v531 = vpack.c.b16 %v523, %v522
    %540 = vmatprep.subr.bf16.mxu0 0
    %541 = vmatpush1.bf16.msra.mxu0 %v524
    %542 = vmatprep.subr.bf16.mxu0 0
    %543 = vmatpush1.bf16.msra.mxu0 %v525
    %544 = vmatprep.subr.bf16.mxu0 0
    %545 = vmatpush1.bf16.msra.mxu0 %v526
    %546 = vmatprep.subr.bf16.mxu0 0
    %547 = vmatpush1.bf16.msra.mxu0 %v527
    %548 = vmatprep.subr.bf16.mxu0 0
    %549 = vmatpush1.bf16.msra.mxu0 %v528
    %550 = vmatprep.subr.bf16.mxu0 0
    %551 = vmatpush1.bf16.msra.mxu0 %v529
    %552 = vmatprep.subr.bf16.mxu0 0
    %553 = vmatpush1.bf16.msra.mxu0 %v530
    %554 = vmatprep.subr.bf16.mxu0 0
    %555 = vmatpush1.bf16.msra.mxu0 %v531
    %556 = vmatprep.subr.bf16.mxu0 0
    %557 = vmatpush1.bf16.msra.mxu0 0
    %558 = vmatprep.subr.bf16.mxu0 0
    %559 = vmatpush1.bf16.msra.mxu0 0
    %560 = vmatprep.subr.bf16.mxu0 0
    %561 = vmatpush1.bf16.msra.mxu0 0
    %562 = vmatprep.subr.bf16.mxu0 0
    %563 = vmatpush1.bf16.msra.mxu0 0
    %564 = vmatprep.subr.bf16.mxu0 0
    %565 = vmatpush1.bf16.msra.mxu0 0
    %566 = vmatprep.subr.bf16.mxu0 0
    %567 = vmatpush1.bf16.msra.mxu0 0
    %568 = vmatprep.subr.bf16.mxu0 0
    %569 = vmatpush1.bf16.msra.mxu0 0
    %570 = vmatprep.subr.bf16.mxu0 0
    %571 = vmatpush1.bf16.msra.mxu0 0
    %572 = vmatprep.mubr.bf16.mxu0 0
    %573 = vmatmul.mubr.bf16.gmra.mrb[0].mxu0 %v468
    %v574 = vpop.f32.mrb[0].mxu0
    %v575 = vadd.f32 %v490, %v574
    %v576 = vpop.f32.mrb[0].mxu0
    %v577 = vpop.f32.mrb[0].mxu0
    %v578 = vadd.f32 %v490, %v577
    %v579 = vpop.f32.mrb[0].mxu0
    %580 = vdwg.mxu0
    %581 = vmax.xlane.f32.xlu0 %v575
    %v582 = vpop.xlane.xlu0 %581
    %583 = vmax.xlane.f32.xlu0 %v578
    %v584 = vpop.xlane.xlu0 %583
    %v585 = vsub.f32 %v575, %v582
    %v586 = vsub.f32 %v578, %v584
    %v587 = vmul.f32 %v585, 1.442695
    %v588 = vpow.pop %v587
    %v589 = vmul.f32 %v586, 1.442695
    %v590 = vpow.pop %v589
    %591 = vadd.xlane.f32.xlu0 %v588
    %v592 = vpop.xlane.xlu0 %591
    %593 = vadd.xlane.f32.xlu0 %v590
    %v594 = vpop.xlane.xlu0 %593
    %v595 = vlog2.pop %v592
    %v596 = vmul.f32 %v595, 0.6931472
    %v597 = vlog2.pop %v594
    %v598 = vmul.f32 %v597, 0.6931472
    %v599 = vadd.f32 %v596, %v582
    %v600 = vadd.f32 %v598, %v584
    %v601 = vsub.f32 %v575, %v599
    %v602 = vsub.f32 %v578, %v600
    %603 = vst [vmem:[%s9] sm:$0xff] %v601
    %604 = vst [vmem:[%s9 + $0x8] sm:$0xff] %v602
    // Predicated region
    $region50: #{classifier_forward.1} parent=1 // pred_check
      _
    $region51: #{classifier_forward.1} parent=1 // pred_check_branch
      %606 = sbr.rel (0) target = $region53
    $region52: #{classifier_forward.1} parent=1 // pred_region
      _
    $region53: #{classifier_forward.1} parent=1 // pred_fallthru
      _
    // Predicated region
    $region54: #{classifier_forward.1} parent=1 // pred_check
      _
    $region55: #{classifier_forward.1} parent=1 // pred_check_branch
      %608 = sbr.rel (0) target = $region57
    $region56: #{classifier_forward.1} parent=1 // pred_region
      _
    $region57: #{classifier_forward.1} parent=1 // pred_fallthru
      _
    %609 = vsyncpa [#allocation3], 1
    %610 = vsyncpa [#allocation5], 1

</llo_original>
